<compile_context>
chip_gen: v5e
topology: v5e:2x2
jax: 0.10.0
libtpu: 0.0.40
codegen_flags: <defaults>
</compile_context>

<pallas_src>
import functools

import jax
import jax.numpy as jnp
from jax.experimental import pallas as pl
from jax.experimental.pallas import tpu as pltpu


def _round_up(x, m):
    return ((x + m - 1) // m) * m


def gcn_kernel(a_ref, xw1_ref, b1_ref, w2_ref, b2_ref, o_ref, acc_ref, *,
               num_classes):
    k = pl.program_id(1)

    @pl.when(k == 0)
    def _init():
        acc_ref[...] = jnp.zeros_like(acc_ref)

    # Partial aggregation: A_hat[row tile, k slab] @ (X @ W1)[k slab, :].
    # bf16 MXU operands, f32 accumulation in VMEM scratch.
    acc_ref[...] += jnp.dot(a_ref[...], xw1_ref[...],
                            preferred_element_type=jnp.float32)

    @pl.when(k == pl.num_programs(1) - 1)
    def _epilogue():
        # GCNConv bias + ReLU (f32 epilogue).
        h = jnp.maximum(acc_ref[...] + b1_ref[...], 0.0)

        # TODO(synk): F.dropout(p=0.5) is identity in eval mode (training=False);
        # training-mode RNG masking is intentionally not applied.

        # Linear into the lane-dense padded class slab (bf16 MXU, f32 accum).
        y = jnp.dot(h.astype(w2_ref.dtype), w2_ref[...],
                    preferred_element_type=jnp.float32) + b2_ref[...]

        # log_softmax over the first `num_classes` lanes only; padding lanes are
        # masked *before* the exp so they can never overflow.
        col = jax.lax.broadcasted_iota(jnp.int32, y.shape, 1)
        valid = col < num_classes
        neg = jnp.float32(-1e30)
        m = jnp.max(jnp.where(valid, y, neg), axis=1, keepdims=True)
        z = jnp.where(valid, y - m, neg)
        se = jnp.sum(jnp.exp(z), axis=1, keepdims=True)
        o_ref[...] = (z - jnp.log(se)).astype(o_ref.dtype)


def _select_tiling(n, h_dim, row_tile_target):
    """Pick (tile_n, tile_k, n_pad, vmem_limit_bytes) from a per-chip VMEM budget."""
    try:
        kind = jax.devices()[0].device_kind.lower()
    except Exception:
        kind = ""
    is_v7 = "v7" in kind
    # Budget for the double-buffered bf16 A_hat slab.  v7x has 64 MiB physical
    # VMEM per TensorCore (and residents are duplicated per TC under "parallel");
    # v5e/v6e have 128 MiB.
    a_budget = (40 << 20) if is_v7 else (96 << 20)

    n_pad = _round_up(max(n, 16), 16)          # bf16-friendly sublane packing
    if n_pad > row_tile_target:
        n_pad = _round_up(n_pad, row_tile_target)
        tile_n = row_tile_target
    else:
        tile_n = n_pad

    # Contraction (column) tile of A_hat: full width when the double-buffered
    # slab fits the budget, otherwise the largest multiple of tile_n that both
    # divides n_pad and fits.
    max_cols = a_budget // (2 * tile_n * 2)
    if n_pad <= max_cols:
        tile_k = n_pad
    else:
        blocks = n_pad // tile_n
        fit = max(1, max_cols // tile_n)
        mult = 1
        for cand in range(min(blocks, fit), 0, -1):
            if blocks % cand == 0:
                mult = cand
                break
        tile_k = mult * tile_n

    c_pad = 128
    vmem_bytes = (
        2 * tile_n * tile_k * 2                              # A_hat slab (2 bufs, bf16)
        + 2 * tile_k * h_dim * 2                             # XW1 slab (2 bufs, bf16)
        + 2 * (h_dim * 4 + h_dim * c_pad * 2 + c_pad * 4)    # b1 / W2 / b2 blocks
        + 2 * tile_n * c_pad * 4                             # output slab (2 bufs, f32)
        + tile_n * h_dim * 4                                 # f32 accumulator scratch
    )
    cap = (60 << 20) if is_v7 else (120 << 20)
    vmem_limit = int(min(cap, max(32 << 20, vmem_bytes + (4 << 20))))
    return tile_n, tile_k, n_pad, vmem_limit


def simple_gcn_forward(a_hat, x, w1, b1, w2, b2, *, row_tile=512):
    n, _f = x.shape
    h_dim = w1.shape[1]
    c = w2.shape[1]
    c_pad = 128                        # lane-dense output slab

    tile_n, tile_k, n_pad, vmem_limit = _select_tiling(n, h_dim, row_tile)
    grid_n, grid_k = n_pad // tile_n, n_pad // tile_k

    # Hoist X @ W1 out of the kernel: one small f32 matmul, rounded once to bf16.
    xw1 = jnp.dot(x.astype(jnp.float32), w1.astype(jnp.float32))          # (n, H)
    xw1_p = jnp.pad(xw1.astype(jnp.bfloat16), ((0, n_pad - n), (0, 0)))

    # Pad A_hat with jnp.pad (fuses with the bf16 cast) -- no second full-size
    # materialization pass over the N^2 array.
    a_p = jnp.pad(a_hat.astype(jnp.bfloat16), ((0, n_pad - n), (0, n_pad - n)))

    b1_r = b1.reshape(1, h_dim).astype(jnp.float32)
    w2_p = jnp.pad(w2.astype(jnp.bfloat16), ((0, 0), (0, c_pad - c)))
    b2_p = jnp.pad(b2.reshape(1, c).astype(jnp.float32), ((0, 0), (0, c_pad - c)))

    kernel = functools.partial(gcn_kernel, num_classes=c)

    cost = pl.CostEstimate(
        flops=2 * n_pad * n_pad * h_dim + 2 * n_pad * h_dim * c_pad,
        transcendentals=n_pad * (c_pad + 1),
        bytes_accessed=(a_p.size * 2 + xw1_p.size * 2 * grid_n
                        + w2_p.size * 2 + b1_r.size * 4 + b2_p.size * 4
                        + n_pad * c_pad * 4),
    )

    out = pl.pallas_call(
        kernel,
        out_shape=jax.ShapeDtypeStruct((n_pad, c_pad), jnp.float32),
        grid_spec=pltpu.PrefetchScalarGridSpec(
            num_scalar_prefetch=0,
            grid=(grid_n, grid_k),
            in_specs=[
                pl.BlockSpec((tile_n, tile_k), lambda i, k: (i, k)),   # A_hat
                pl.BlockSpec((tile_k, h_dim), lambda i, k: (k, 0)),    # X @ W1
                pl.BlockSpec((1, h_dim), lambda i, k: (0, 0)),         # b1
                pl.BlockSpec((h_dim, c_pad), lambda i, k: (0, 0)),     # W2 (bf16)
                pl.BlockSpec((1, c_pad), lambda i, k: (0, 0)),         # b2
            ],
            out_specs=pl.BlockSpec((tile_n, c_pad), lambda i, k: (i, 0)),
            scratch_shapes=[pltpu.VMEM((tile_n, h_dim), jnp.float32)],
        ),
        compiler_params=pltpu.CompilerParams(
            # Row tiles shard across TensorCores on v7x; the contraction axis is
            # the (last) accumulation axis.
            dimension_semantics=("parallel", "arbitrary"),
            vmem_limit_bytes=vmem_limit,
        ),
        cost_estimate=cost,
    )(a_p, xw1_p, b1_r, w2_p, b2_p)

    # Slice the real nodes / classes out of the padded lane-dense slab.
    return out[:n, :c]


def build_normalized_adjacency(edge_index, num_nodes):
    """edge_index: [2, E] int array (src, dst). Returns D^-1/2 (A+I) D^-1/2."""
    src, dst = edge_index[0], edge_index[1]
    adj = jnp.zeros((num_nodes, num_nodes), jnp.float32)
    # message passing direction: dst aggregates from src -> A[dst, src] = 1
    adj = adj.at[dst, src].set(1.0)
    # add self-loops (set, not add: idempotent if a self-loop already exists)
    diag = jnp.arange(num_nodes)
    adj = adj.at[diag, diag].set(1.0)
    deg = jnp.sum(adj, axis=1)
    d_inv_sqrt = 1.0 / jnp.sqrt(deg)   # deg >= 1 after self-loops
    return adj * d_inv_sqrt[:, None] * d_inv_sqrt[None, :]


def _reference(a_hat, x, w1, b1, w2, b2):
    h = jnp.maximum(a_hat @ x @ w1 + b1, 0.0)
    y = h @ w2 + b2
    return jax.nn.log_softmax(y, axis=1)


if __name__ == "__main__":
    # Small, deterministic problem sizes.
    num_nodes = 16      # N
    input_dim = 8       # F (selected features)
    hidden_dim = 16     # H
    output_dim = 2      # C

    key = jax.random.PRNGKey(0)
    k_x, k_w1, k_b1, k_w2, k_b2 = jax.random.split(key, 5)

    # Node features (standardized-feature stand-in).
    x = jax.random.normal(k_x, (num_nodes, input_dim), dtype=jnp.float32)

    # Deterministic ring graph (bidirectional edges), [2, E].
    src = jnp.arange(num_nodes, dtype=jnp.int32)
    dst = (src + 1) % num_nodes
    edge_index = jnp.concatenate(
        [jnp.stack([src, dst], axis=0), jnp.stack([dst, src], axis=0)], axis=1
    )
    a_hat = build_normalized_adjacency(edge_index, num_nodes)

    # Parameters (deterministic init in-script; shapes match the PyTorch module).
    w1 = jax.random.normal(k_w1, (input_dim, hidden_dim), dtype=jnp.float32) * 0.1
    b1 = jax.random.normal(k_b1, (1, hidden_dim), dtype=jnp.float32) * 0.01
    w2 = jax.random.normal(k_w2, (hidden_dim, output_dim), dtype=jnp.float32) * 0.1
    b2 = jax.random.normal(k_b2, (1, output_dim), dtype=jnp.float32) * 0.01

    out = simple_gcn_forward(a_hat, x, w1, b1, w2, b2)
    jax.block_until_ready(out)

    # Sanity: shape, normalized rows, and agreement with an f32 JAX reference
    # (loose tolerance because MXU operands are bf16).
    ref = _reference(a_hat, x, w1, b1, w2, b2)
    probs_sum = jnp.sum(jnp.exp(out), axis=1)
    assert out.shape == (num_nodes, output_dim)
    assert bool(jnp.all(jnp.abs(probs_sum - 1.0) < 1e-4))
    assert bool(jnp.max(jnp.abs(out - ref)) < 5e-2)

    print("KERNEL_OK")
</pallas_src>

<mosaic_0001>
module attributes {stable_mosaic.version = 11 : i64} {
  func.func @gcn_kernel(%arg0: i32, %arg1: i32, %arg2: memref<16x16xbf16, #tpu.memory_space<vmem>>, %arg3: memref<16x16xbf16, #tpu.memory_space<vmem>>, %arg4: memref<1x16xf32, #tpu.memory_space<vmem>>, %arg5: memref<16x128xbf16, #tpu.memory_space<vmem>>, %arg6: memref<1x128xf32, #tpu.memory_space<vmem>>, %arg7: memref<16x128xf32, #tpu.memory_space<vmem>>, %arg8: memref<16x16xf32, #tpu.memory_space<vmem>>) attributes {dimension_semantics = [#tpu.dimension_semantics<parallel>, #tpu.dimension_semantics<arbitrary>], iteration_bounds = array<i64: 1, 1>, scalar_prefetch = 0 : i64, scratch_operands = 1 : i64, tpu.core_type = #tpu.core_type<tc>, window_params = [{transform_indices = @transform_0, window_bounds = array<i64: 16, 16>}, {transform_indices = @transform_1, window_bounds = array<i64: 16, 16>}, {pipeline_mode = #tpu.pipeline_mode<synchronous>, transform_indices = @transform_2, window_bounds = array<i64: 1, 16>}, {pipeline_mode = #tpu.pipeline_mode<synchronous>, transform_indices = @transform_3, window_bounds = array<i64: 16, 128>}, {pipeline_mode = #tpu.pipeline_mode<synchronous>, transform_indices = @transform_4, window_bounds = array<i64: 1, 128>}, {transform_indices = @transform_5, window_bounds = array<i64: 16, 128>}]} {
    %c0_i32 = arith.constant 0 : i32
    %0 = arith.cmpi eq, %arg1, %c0_i32 : i32
    %1 = arith.extui %0 : i1 to i32
    %c0_i32_0 = arith.constant 0 : i32
    %2 = arith.cmpi ne, %1, %c0_i32_0 : i32
    scf.if %2 {
      %cst_10 = arith.constant 0.000000e+00 : f32
      %12 = vector.broadcast %cst_10 : f32 to vector<16x16xf32>
      %c0_11 = arith.constant 0 : index
      %c0_12 = arith.constant 0 : index
      %13 = vector.load %arg8[%c0_11, %c0_12] : memref<16x16xf32, #tpu.memory_space<vmem>>, vector<16x16xf32>
      tpu.vector_store %arg8[%c0_11, %c0_12], %12 {strides = array<i32>} : memref<16x16xf32, #tpu.memory_space<vmem>>, vector<16x16xf32>,
    } else {
    }
    %c0 = arith.constant 0 : index
    %c0_1 = arith.constant 0 : index
    %3 = vector.load %arg8[%c0, %c0_1] : memref<16x16xf32, #tpu.memory_space<vmem>>, vector<16x16xf32>
    %c0_2 = arith.constant 0 : index
    %c0_3 = arith.constant 0 : index
    %4 = vector.load %arg2[%c0_2, %c0_3] : memref<16x16xbf16, #tpu.memory_space<vmem>>, vector<16x16xbf16>
    %c0_4 = arith.constant 0 : index
    %c0_5 = arith.constant 0 : index
    %5 = vector.load %arg3[%c0_4, %c0_5] : memref<16x16xbf16, #tpu.memory_space<vmem>>, vector<16x16xbf16>
    %cst = arith.constant dense<0.000000e+00> : vector<16x16xf32>
    %6 = tpu.matmul %4, %5, %cst {dimension_numbers = #tpu.dot_dimension_numbers<[1], [0], [0], [1], [0, 0, 1, 1], [], []>} : vector<16x16xbf16>, vector<16x16xbf16>, vector<16x16xf32> -> vector<16x16xf32>
    %7 = arith.addf %3, %6 : vector<16x16xf32>
    %c0_6 = arith.constant 0 : index
    %c0_7 = arith.constant 0 : index
    %8 = vector.load %arg8[%c0_6, %c0_7] : memref<16x16xf32, #tpu.memory_space<vmem>>, vector<16x16xf32>
    tpu.vector_store %arg8[%c0_6, %c0_7], %7 {strides = array<i32>} : memref<16x16xf32, #tpu.memory_space<vmem>>, vector<16x16xf32>,
    %c0_i32_8 = arith.constant 0 : i32
    %9 = arith.cmpi eq, %arg1, %c0_i32_8 : i32
    %10 = arith.extui %9 : i1 to i32
    %c0_i32_9 = arith.constant 0 : i32
    %11 = arith.cmpi ne, %10, %c0_i32_9 : i32
    scf.if %11 {
      %c0_10 = arith.constant 0 : index
      %c0_11 = arith.constant 0 : index
      %12 = vector.load %arg8[%c0_10, %c0_11] : memref<16x16xf32, #tpu.memory_space<vmem>>, vector<16x16xf32>
      %c0_12 = arith.constant 0 : index
      %c0_13 = arith.constant 0 : index
      %13 = vector.load %arg4[%c0_12, %c0_13] : memref<1x16xf32, #tpu.memory_space<vmem>>, vector<1x16xf32>
      %14 = vector.broadcast %13 : vector<1x16xf32> to vector<16x16xf32>
      %15 = arith.addf %12, %14 : vector<16x16xf32>
      %cst_14 = arith.constant 0.000000e+00 : f32
      %16 = vector.broadcast %cst_14 : f32 to vector<16x16xf32>
      %17 = arith.maximumf %15, %16 : vector<16x16xf32>
      %18 = arith.truncf %17 : vector<16x16xf32> to vector<16x16xbf16>
      %c0_15 = arith.constant 0 : index
      %c0_16 = arith.constant 0 : index
      %19 = vector.load %arg5[%c0_15, %c0_16] : memref<16x128xbf16, #tpu.memory_space<vmem>>, vector<16x128xbf16>
      %cst_17 = arith.constant dense<0.000000e+00> : vector<16x128xf32>
      %20 = tpu.matmul %18, %19, %cst_17 {dimension_numbers = #tpu.dot_dimension_numbers<[1], [0], [0], [1], [0, 0, 1, 1], [], []>} : vector<16x16xbf16>, vector<16x128xbf16>, vector<16x128xf32> -> vector<16x128xf32>
      %c0_18 = arith.constant 0 : index
      %c0_19 = arith.constant 0 : index
      %21 = vector.load %arg6[%c0_18, %c0_19] : memref<1x128xf32, #tpu.memory_space<vmem>>, vector<1x128xf32>
      %22 = vector.broadcast %21 : vector<1x128xf32> to vector<16x128xf32>
      %23 = arith.addf %20, %22 : vector<16x128xf32>
      %24 = tpu.iota {dimensions = array<i32: 1>} : vector<16x128xi32>
      %c2_i32 = arith.constant 2 : i32
      %25 = vector.broadcast %c2_i32 : i32 to vector<16x128xi32>
      %26 = arith.cmpi slt, %24, %25 : vector<16x128xi32>
      %cst_20 = arith.constant -1.000000e+30 : f32
      %27 = vector.broadcast %cst_20 : f32 to vector<16x128xf32>
      %28 = arith.select %26, %23, %27 : vector<16x128xi1>, vector<16x128xf32>
      %cst_21 = arith.constant dense<0xFF800000> : vector<16xf32>
      %29 = vector.multi_reduction <maximumf>, %28, %cst_21 [1] : vector<16x128xf32> to vector<16xf32>
      %30 = vector.shape_cast %29 : vector<16xf32> to vector<16x1xf32>
      %31 = vector.broadcast %30 : vector<16x1xf32> to vector<16x128xf32>
      %32 = arith.subf %23, %31 : vector<16x128xf32>
      %cst_22 = arith.constant -1.000000e+30 : f32
      %33 = vector.broadcast %cst_22 : f32 to vector<16x128xf32>
      %34 = arith.select %26, %32, %33 : vector<16x128xi1>, vector<16x128xf32>
      %35 = math.exp %34 : vector<16x128xf32>
      %cst_23 = arith.constant dense<0.000000e+00> : vector<16xf32>
      %36 = vector.multi_reduction <add>, %35, %cst_23 [1] : vector<16x128xf32> to vector<16xf32>
      %37 = vector.shape_cast %36 : vector<16xf32> to vector<16x1xf32>
      %38 = math.log %37 : vector<16x1xf32>
      %39 = vector.broadcast %38 : vector<16x1xf32> to vector<16x128xf32>
      %40 = arith.subf %34, %39 : vector<16x128xf32>
      %c0_24 = arith.constant 0 : index
      %c0_25 = arith.constant 0 : index
      %41 = vector.load %arg7[%c0_24, %c0_25] : memref<16x128xf32, #tpu.memory_space<vmem>>, vector<16x128xf32>
      tpu.vector_store %arg7[%c0_24, %c0_25], %40 {strides = array<i32>} : memref<16x128xf32, #tpu.memory_space<vmem>>, vector<16x128xf32>,
    } else {
    }
    return
  }
  func.func @transform_0(%arg0: i32, %arg1: i32) -> (i32, i32) {
    %c0_i32 = arith.constant 0 : i32
    return %arg0, %arg1 : i32, i32
  }
  func.func @transform_1(%arg0: i32, %arg1: i32) -> (i32, i32) {
    %c0_i32 = arith.constant 0 : i32
    %c0_i32_0 = arith.constant 0 : i32
    return %arg1, %c0_i32 : i32, i32
  }
  func.func @transform_2(%arg0: i32, %arg1: i32) -> (i32, i32) {
    %c0_i32 = arith.constant 0 : i32
    %c0_i32_0 = arith.constant 0 : i32
    %c0_i32_1 = arith.constant 0 : i32
    return %c0_i32, %c0_i32_0 : i32, i32
  }
  func.func @transform_3(%arg0: i32, %arg1: i32) -> (i32, i32) {
    %c0_i32 = arith.constant 0 : i32
    %c0_i32_0 = arith.constant 0 : i32
    %c0_i32_1 = arith.constant 0 : i32
    return %c0_i32, %c0_i32_0 : i32, i32
  }
  func.func @transform_4(%arg0: i32, %arg1: i32) -> (i32, i32) {
    %c0_i32 = arith.constant 0 : i32
    %c0_i32_0 = arith.constant 0 : i32
    %c0_i32_1 = arith.constant 0 : i32
    return %c0_i32, %c0_i32_0 : i32, i32
  }
  func.func @transform_5(%arg0: i32, %arg1: i32) -> (i32, i32) {
    %c0_i32 = arith.constant 0 : i32
    %c0_i32_0 = arith.constant 0 : i32
    return %arg0, %c0_i32 : i32, i32
  }
}

</mosaic_0001>

<llo_original>
// kernel: tpu_custom_call.1
$region0: #{tpu_custom_call.1}
  #allocation0 [shape = 'u32[]', space=smem, size = 0x4, offset = 0x4, fixed_abs, tag = 'smem constant byte address 0x4 - core index']
  #allocation1 [shape = 'u32[72,128]{1,0:T(1,128)}', space=vmem, size = 0x9000, scoped, tag = 'internal scratch']
  #allocation2 [shape = 'f32[16,16]{1,0:T(8,128)}', space=vmem, size = 0x2000, scoped, tag = 'scratch operand']
  %s0 = inlined_call_operand.hbm [shape: bf16[16,16], index: 0, kind: input, shape index: {}]
  %s1 = inlined_call_operand.hbm [shape: bf16[16,16], index: 1, kind: input, shape index: {}]
  %s2 = inlined_call_operand.vmem [shape: f32[1,16], index: 2, kind: input, shape index: {}]
  %s3 = inlined_call_operand.hbm [shape: bf16[16,128], index: 3, kind: input, shape index: {}]
  %s4 = inlined_call_operand.vmem [shape: f32[1,128], index: 4, kind: input, shape index: {}]
  %s5 = inlined_call_operand.hbm [shape: f32[16,128], index: 5, kind: output, shape index: {}]
  %s6 = sld [smem:[#allocation0]]
  $region50: #{tpu_custom_call.1} parent=0
    _
  %s8 = ssub.s32 1, %s6
  %s9 = scalar_select 0, %s8, %s6
  $region1: #{tpu_custom_call.1} parent=0
    #allocation3 [shape = 'u8[4096]{0}', space=vmem, size = 0x1000, scoped, tag = 'input window, operand 0, single buffered']
    #allocation4 [shape = 's32[1]{0}', space=sflag, size = 0x4, scoped, tag = 'scoped memory for tpu_custom_call.1']
    #allocation5 [shape = 's32[1]{0}', space=sflag, size = 0x4, scoped, tag = 'scoped memory for tpu_custom_call.1']
    #allocation6 [shape = 'u8[4096]{0}', space=vmem, size = 0x1000, scoped, tag = 'input window, operand 1, single buffered']
    #allocation7 [shape = 's32[1]{0}', space=sflag, size = 0x4, scoped, tag = 'scoped memory for tpu_custom_call.1']
    #allocation8 [shape = 'u8[4096]{0}', space=vmem, size = 0x1000, scoped, tag = 'input window, operand 3, single buffered']
    #allocation9 [shape = 'u8[8192]{0}', space=vmem, size = 0x2000, scoped, tag = 'output window, operand 0, single buffered']
    %10 = vsyncpa [#allocation4], 0
    %11 = vsyncpa [#allocation7], 0
    %12 = vsyncpa [#allocation5], 0
    // Predicated region
    $region2: #{tpu_custom_call.1} parent=1 // pred_check
      _
    $region3: #{tpu_custom_call.1} parent=1 // pred_check_branch
      %14 = sbr.rel (0) target = $region5
    $region4: #{tpu_custom_call.1} parent=1 // pred_region
      %16 = vsyncadd [#allocation4], 0
      %s17 = sshll.u32 %s0, 4
      %s18 = int_to_ptr.hbm [resolvable:$true] %s17
      %s19 = sshll.u32 [#allocation3], 4
      %s20 = int_to_ptr.vmem [resolvable:$true] %s19
      %25 = dma.hbm_to_vmem [thread:$0]  %s18, 128, %s20, [#allocation4], 64, 64, 4
    $region5: #{tpu_custom_call.1} parent=1 // pred_fallthru
      _
    // Predicated region
    $region6: #{tpu_custom_call.1} parent=1 // pred_check
      _
    $region7: #{tpu_custom_call.1} parent=1 // pred_check_branch
      %27 = sbr.rel (0) target = $region9
    $region8: #{tpu_custom_call.1} parent=1 // pred_region
      %29 = vsyncadd [#allocation7], 0
      %s30 = sshll.u32 %s1, 4
      %s31 = int_to_ptr.hbm [resolvable:$true] %s30
      %s32 = sshll.u32 [#allocation6], 4
      %s33 = int_to_ptr.vmem [resolvable:$true] %s32
      %38 = dma.hbm_to_vmem [thread:$0]  %s31, 128, %s33, [#allocation7], 64, 64, 4
    $region9: #{tpu_custom_call.1} parent=1 // pred_fallthru
      _
    // Predicated region
    $region10: #{tpu_custom_call.1} parent=1 // pred_check
      _
    $region11: #{tpu_custom_call.1} parent=1 // pred_check_branch
      %40 = sbr.rel (0) target = $region13
    $region12: #{tpu_custom_call.1} parent=1 // pred_region
      _
    $region13: #{tpu_custom_call.1} parent=1 // pred_fallthru
      _
    // Predicated region
    $region14: #{tpu_custom_call.1} parent=1 // pred_check
      _
    $region15: #{tpu_custom_call.1} parent=1 // pred_check_branch
      %42 = sbr.rel (0) target = $region17
    $region16: #{tpu_custom_call.1} parent=1 // pred_region
      %44 = vsyncadd [#allocation7], 0
      %s45 = sshll.u32 %s3, 4
      %s46 = int_to_ptr.hbm [resolvable:$true] %s45
      %s47 = sshll.u32 [#allocation8], 4
      %s48 = int_to_ptr.vmem [resolvable:$true] %s47
      %53 = dma.hbm_to_vmem [thread:$0]  %s46, 128, %s48, [#allocation7], 64, 64, 4
    $region17: #{tpu_custom_call.1} parent=1 // pred_fallthru
      _
    // Predicated region
    $region18: #{tpu_custom_call.1} parent=1 // pred_check
      _
    $region19: #{tpu_custom_call.1} parent=1 // pred_check_branch
      %55 = sbr.rel (0) target = $region21
    $region20: #{tpu_custom_call.1} parent=1 // pred_region
      _
    $region21: #{tpu_custom_call.1} parent=1 // pred_fallthru
      _
    // Predicated region
    $region22: #{tpu_custom_call.1} parent=1 // pred_check
      _
    $region23: #{tpu_custom_call.1} parent=1 // pred_check_branch
      %57 = sbr.rel (0) target = $region25
    $region24: #{tpu_custom_call.1} parent=1 // pred_region
      %59 = dma.done [#allocation4], 128
    $region25: #{tpu_custom_call.1} parent=1 // pred_fallthru
      _
    // Predicated region
    $region26: #{tpu_custom_call.1} parent=1 // pred_check
      _
    $region27: #{tpu_custom_call.1} parent=1 // pred_check_branch
      %61 = sbr.rel (0) target = $region29
    $region28: #{tpu_custom_call.1} parent=1 // pred_region
      %63 = dma.done [#allocation7], 128
    $region29: #{tpu_custom_call.1} parent=1 // pred_fallthru
      _
    // Predicated region
    $region30: #{tpu_custom_call.1} parent=1 // pred_check
      _
    $region31: #{tpu_custom_call.1} parent=1 // pred_check_branch
      %65 = sbr.rel (0) target = $region33
    $region32: #{tpu_custom_call.1} parent=1 // pred_region
      %67 = dma.done [#allocation7], 128
    $region33: #{tpu_custom_call.1} parent=1 // pred_fallthru
      _
    %p69 = scmp.eq.s32.totalorder 0, 0
    // Predicated region
    $region34: #{tpu_custom_call.1} parent=1 // pred_check
      %p70 = pneg %p69
    $region35: #{tpu_custom_call.1} parent=1 // pred_check_branch
      %72 = sbr.rel (%p70) target = $region37
    $region36: #{tpu_custom_call.1} parent=1 // pred_region
      %vm73 = vcmask 130048
      %74 = vst.msk [vmem:[#allocation2] sm:$0xff] %vm73, 0.0
      %75 = vst.msk [vmem:[#allocation2 + $0x8] sm:$0xff] %vm73, 0.0
    $region37: #{tpu_custom_call.1} parent=1 // pred_fallthru
      _
    %v76 = vld [vmem:[#allocation2] sm:$0xff]
    %v77 = vld [vmem:[#allocation2 + $0x8] sm:$0xff]
    %v78 = vld [vmem:[#allocation3] sm:$0xf]
    %v79 = vld [vmem:[#allocation3 + $0x4] sm:$0xf]
    %v80 = vld [vmem:[#allocation6] sm:$0xf]
    %v81 = vld [vmem:[#allocation6 + $0x4] sm:$0xf]
    %v84 = vunpack.c.l.b16 %v78
    %v85 = vunpack.c.l.b16 %v79
    %v86 = vpack.c.b16 %v85, %v84
    %v89 = vunpack.c.l.b16 %v80
    %v90 = vunpack.c.l.b16 %v81
    %v91 = vpack.c.b16 %v90, %v89
    %vm93 = vcmask 130048
    %v95 = vsel %vm93, %v86, 0
    %97 = vmatpush.bf16.msra.mxu0 0
    %98 = vmatpush.bf16.msra.mxu0 0
    %99 = vmatpush.bf16.msra.mxu0 0
    %100 = vmatpush.bf16.msra.mxu0 0
    %101 = vmatpush.bf16.msra.mxu0 0
    %102 = vmatpush.bf16.msra.mxu0 0
    %103 = vmatpush.bf16.msra.mxu0 0
    %104 = vmatpush.bf16.msra.mxu0 %v91
    %105 = vmatmul.bf16.gmra.mxu0 %v95
    %v106 = vpop.f32.mrf.mxu0
    %v107 = vadd.f32 0.0, %v106
    %v108 = vpop.f32.mrf.mxu0
    %v109 = vadd.f32 0.0, %v108
    %110 = vdwg.mxu0
    %v111 = vadd.f32 %v76, %v107
    %v112 = vadd.f32 %v77, %v109
    %113 = vst.msk [vmem:[#allocation2] sm:$0xff] %vm93, %v111
    %114 = vst.msk [vmem:[#allocation2 + $0x8] sm:$0xff] %vm93, %v112
    // Predicated region
    $region38: #{tpu_custom_call.1} parent=1 // pred_check
      %p115 = pneg %p69
    $region39: #{tpu_custom_call.1} parent=1 // pred_check_branch
      %117 = sbr.rel (%p115) target = $region41
    $region40: #{tpu_custom_call.1} parent=1 // pred_region
      %v118 = vld [vmem:[#allocation2] sm:$0xff]
      %v119 = vld [vmem:[#allocation2 + $0x8] sm:$0xff]
      %v120 = vld [vmem:[%s2] sm:$0x1]
      %v122 = vperm.slane %v120, 0
      %v124 = vadd.f32 %v118, %v122
      %v125 = vadd.f32 %v119, %v122
      %v126 = vmax.f32 %v124, 0.0
      %v127 = vmax.f32 %v125, 0.0
      %v128 = vpack.c.bf16 %v127, %v126
      %v129 = vld [vmem:[#allocation8] sm:$0xf]
      %v130 = vld [vmem:[#allocation8 + $0x4] sm:$0xf]
      %v131 = vld [vmem:[%s4] sm:$0x1]
      %v133 = vperm.slane %v131, 0
      %v137 = vunpack.c.l.b16 %v129
      %v138 = vunpack.c.l.b16 %v130
      %v139 = vpack.c.b16 %v138, %v137
      %v142 = vsel %vm93, %v128, 0
      %144 = vmatpush.bf16.msra.mxu0 0
      %145 = vmatpush.bf16.msra.mxu0 0
      %146 = vmatpush.bf16.msra.mxu0 0
      %147 = vmatpush.bf16.msra.mxu0 0
      %148 = vmatpush.bf16.msra.mxu0 0
      %149 = vmatpush.bf16.msra.mxu0 0
      %150 = vmatpush.bf16.msra.mxu0 0
      %151 = vmatpush.bf16.msra.mxu0 %v139
      %152 = vmatmul.bf16.gmra.mxu0 %v142
      %v153 = vpop.f32.mrf.mxu0
      %v154 = vadd.f32 %v133, %v153
      %v155 = vpop.f32.mrf.mxu0
      %v156 = vadd.f32 %v133, %v155
      %157 = vdwg.mxu0
      %v158 = vlaneseq
      %v159 = vand.u32 %v158, 127
      %vm160 = vcmp.lt.s32.totalorder %v159, 2
      %v161 = vsel %vm160, %v154, -1e+30
      %v162 = vsel %vm160, %v156, -1e+30
      %163 = vmax.xlane.f32.xlu0 %v161
      %v164 = vpop.xlane.xlu0 %163
      %165 = vmax.xlane.f32.xlu0 %v162
      %v166 = vpop.xlane.xlu0 %165
      %v167 = vsub.f32 %v154, %v164
      %v168 = vsub.f32 %v156, %v166
      %v169 = vsel %vm160, %v167, -1e+30
      %v170 = vsel %vm160, %v168, -1e+30
      %v171 = vmul.f32 %v169, 1.442695
      %v172 = vpow.pop %v171
      %v173 = vmul.f32 %v170, 1.442695
      %v174 = vpow.pop %v173
      %175 = vadd.xlane.f32.xlu0 %v172
      %v176 = vpop.xlane.xlu0 %175
      %177 = vadd.xlane.f32.xlu0 %v174
      %v178 = vpop.xlane.xlu0 %177
      %v179 = vlog2.pop %v176
      %v180 = vmul.f32 %v179, 0.6931472
      %v181 = vlog2.pop %v178
      %v182 = vmul.f32 %v181, 0.6931472
      %v183 = vsub.f32 %v169, %v180
      %v184 = vsub.f32 %v170, %v182
      %185 = vst [vmem:[#allocation9] sm:$0xff] %v183
      %186 = vst [vmem:[#allocation9 + $0x8] sm:$0xff] %v184
    $region41: #{tpu_custom_call.1} parent=1 // pred_fallthru
      _
    // Predicated region
    $region42: #{tpu_custom_call.1} parent=1 // pred_check
      _
    $region43: #{tpu_custom_call.1} parent=1 // pred_check_branch
      %188 = sbr.rel (0) target = $region45
    $region44: #{tpu_custom_call.1} parent=1 // pred_region
      %190 = vsyncadd [#allocation5], 0
      %s191 = sshll.u32 [#allocation9], 4
      %s192 = int_to_ptr.vmem [resolvable:$true] %s191
      %s193 = sshll.u32 %s5, 4
      %s194 = int_to_ptr.hbm [resolvable:$true] %s193
      %199 = dma.vmem_to_hbm [thread:$0]  %s192, 256, %s194, [#allocation5], 128, 128, 8
    $region45: #{tpu_custom_call.1} parent=1 // pred_fallthru
      _
    // Predicated region
    $region46: #{tpu_custom_call.1} parent=1 // pred_check
      _
    $region47: #{tpu_custom_call.1} parent=1 // pred_check_branch
      %201 = sbr.rel (0) target = $region49
    $region48: #{tpu_custom_call.1} parent=1 // pred_region
      %203 = dma.done [#allocation5], 256
    $region49: #{tpu_custom_call.1} parent=1 // pred_fallthru
      _
    %204 = vsyncpa [#allocation4], 1
    %205 = vsyncpa [#allocation7], 1
    %206 = vsyncpa [#allocation5], 1

</llo_original>
